<compile_context>
chip_gen: v5e
topology: v5e:2x2
jax: 0.10.0
libtpu: 0.0.40
codegen_flags: <defaults>
</compile_context>

<pallas_src>
import functools

import jax
import jax.numpy as jnp
from jax.experimental import pallas as pl
from jax.experimental.pallas import tpu as pltpu

NEG_SLOPE = 0.01  # F.leaky_relu default
BN_EPS = 1e-5     # nn.BatchNorm1d default


def _round_up(x, m):
    return ((x + m - 1) // m) * m


def _has_bf16_valu():
    """v5e has no bf16 VALU -> keep the elementwise epilogue in f32 there."""
    try:
        kind = jax.devices()[0].device_kind.lower()
    except Exception:
        return True
    return not ("v5 lite" in kind or "v5e" in kind or "v5litepod" in kind)


def _poker_kernel(x_ref,
                  w1_ref, b1_ref,
                  w2_ref, b2_ref,
                  w3_ref, b3_ref,
                  w4_ref, b4_ref,
                  wh_ref, bh_ref,
                  out_ref, *, output_dim, bf16_epilogue):
    def block(h, w_ref, b_ref):
        # Linear with BN pre-folded into (w, b), then LeakyReLU.
        y = jnp.dot(h, w_ref[...], preferred_element_type=jnp.float32)
        if bf16_epilogue:
            # bf16 bias-add + leaky-ReLU (v6e/v7x bf16 VALU); result feeds the
            # next MXU dot directly.
            y = y.astype(jnp.bfloat16) + b_ref[...]
            return jnp.maximum(y, NEG_SLOPE * y)
        # f32 epilogue (v5e), cast once for the next dot.
        y = y + b_ref[...]
        return jnp.maximum(y, NEG_SLOPE * y).astype(jnp.bfloat16)

    h = x_ref[...]                     # bf16 already (cast in the wrapper)
    h = block(h, w1_ref, b1_ref)
    h = block(h, w2_ref, b2_ref)
    h = block(h, w3_ref, b3_ref)
    h = block(h, w4_ref, b4_ref)

    # Fused (action | value | pad) head: one MXU pass, one lane-dense store.
    # Head bias + softmax math stay in f32 (the -1e30 sentinel is not bf16-safe).
    head = jnp.dot(h, wh_ref[...],
                   preferred_element_type=jnp.float32) + bh_ref[...]

    lane = jax.lax.broadcasted_iota(jnp.int32, head.shape, 1)
    is_logit = lane < output_dim

    # Masked softmax over the first `output_dim` lanes (exact normalisation).
    masked = jnp.where(is_logit, head, jnp.float32(-1e30))
    m = jnp.max(masked, axis=-1, keepdims=True)
    e = jnp.exp(masked - m)
    probs = e / jnp.sum(e, axis=-1, keepdims=True)

    # Output slab: probs in lanes [0, output_dim), raw value in lane
    # output_dim, zeros elsewhere; stored as bf16 (half the writeback bytes).
    slab = jnp.where(is_logit, probs,
                     jnp.where(lane == output_dim, head, 0.0))
    out_ref[...] = slab.astype(out_ref.dtype)


def poker_small_model_forward(x, params, tile_b=512, bf16_epilogue=None):
    """x: [B, input_dim] (or [B, S, input_dim]) float32. params: f32 dict."""
    if x.ndim == 3:                    # mirror the module: take last timestep
        x = x[:, -1, :]
    B, input_dim = x.shape
    H = params["w1"].shape[1]
    output_dim = params["wa"].shape[1]
    if bf16_epilogue is None:
        bf16_epilogue = _has_bf16_valu()

    # ---- wrapper-side folding / packing (free math, done in f32) -----------
    def fold_linear_bn(w, b, gamma, beta, mean, var):
        scale = gamma / jnp.sqrt(var + BN_EPS)
        shift = beta - mean * scale
        return w * scale[None, :], b * scale + shift

    folded = []
    for i in range(1, 5):
        w_f, b_f = fold_linear_bn(params[f"w{i}"], params[f"b{i}"],
                                  params[f"bn{i}_g"], params[f"bn{i}_b"],
                                  params[f"bn{i}_m"], params[f"bn{i}_v"])
        folded.append((w_f, b_f))

    # Fused head: [wa | wv] padded to a lane-dense width.
    N_pad = _round_up(output_dim + 1, 128)
    wh = jnp.concatenate([params["wa"], params["wv"]], axis=1)
    wh = jnp.pad(wh, ((0, 0), (0, N_pad - (output_dim + 1))))
    bh = jnp.concatenate([params["ba"], params["bv"]], axis=0)
    bh = jnp.pad(bh, (0, N_pad - (output_dim + 1)))

    # Batch tiling: big tiles to amortise per-step overhead, but keep >= 2
    # grid steps when the batch allows it (feeds both v7x TensorCores).
    tb = min(tile_b, _round_up(B, 8))
    if B > 8 and _round_up(B, tb) // tb < 2:
        tb = max(8, _round_up((tb + 1) // 2, 8))
    B_pad = _round_up(B, tb)

    # x: no K padding (native input_dim lanes), bf16, batch-padded only.
    x_pad = jnp.pad(x, ((0, B_pad - B), (0, 0))).astype(jnp.bfloat16)

    # Weights in bf16; hidden biases bf16 iff bf16 epilogue; head bias f32.
    act_dtype = jnp.bfloat16 if bf16_epilogue else jnp.float32
    args = [x_pad]
    for w_f, b_f in folded:
        args += [w_f.astype(jnp.bfloat16), b_f[None, :].astype(act_dtype)]
    args += [wh.astype(jnp.bfloat16), bh[None, :].astype(jnp.float32)]

    # ---- pallas_call --------------------------------------------------------
    const = lambda i: (0, 0)
    in_specs = [
        pl.BlockSpec((tb, input_dim), lambda i: (i, 0)),       # x: batch-tiled
        pl.BlockSpec((input_dim, H), const), pl.BlockSpec((1, H), const),
        pl.BlockSpec((H, H), const),         pl.BlockSpec((1, H), const),
        pl.BlockSpec((H, H), const),         pl.BlockSpec((1, H), const),
        pl.BlockSpec((H, H), const),         pl.BlockSpec((1, H), const),
        pl.BlockSpec((H, N_pad), const),     pl.BlockSpec((1, N_pad), const),
    ]

    out = pl.pallas_call(
        functools.partial(_poker_kernel, output_dim=output_dim,
                          bf16_epilogue=bf16_epilogue),
        out_shape=jax.ShapeDtypeStruct((B_pad, N_pad), jnp.bfloat16),
        grid=(B_pad // tb,),
        in_specs=in_specs,
        out_specs=pl.BlockSpec((tb, N_pad), lambda i: (i, 0)),
        compiler_params=pltpu.CompilerParams(
            dimension_semantics=("parallel",)),
    )(*args)

    probs = out[:B, :output_dim].astype(jnp.float32)
    value = out[:B, output_dim:output_dim + 1].astype(jnp.float32)
    return probs, value


def init_params(key, input_dim, output_dim, hidden_dim):
    """Deterministic synthetic parameters (shapes mirror the nn.Module)."""
    ks = jax.random.split(key, 16)
    p = {}

    def linear(kw, kb, fan_in, fan_out):
        lim = 1.0 / jnp.sqrt(fan_in)
        w = jax.random.uniform(kw, (fan_in, fan_out), jnp.float32, -lim, lim)
        b = jax.random.uniform(kb, (fan_out,), jnp.float32, -lim, lim)
        return w, b

    p["w1"], p["b1"] = linear(ks[0], ks[1], input_dim, hidden_dim)
    p["w2"], p["b2"] = linear(ks[2], ks[3], hidden_dim, hidden_dim)
    p["w3"], p["b3"] = linear(ks[4], ks[5], hidden_dim, hidden_dim)
    p["w4"], p["b4"] = linear(ks[6], ks[7], hidden_dim, hidden_dim)
    p["wa"], p["ba"] = linear(ks[8], ks[9], hidden_dim, output_dim)
    p["wv"], p["bv"] = linear(ks[10], ks[11], hidden_dim, 1)

    for i, kk in zip(range(1, 5), jax.random.split(ks[12], 4)):
        kg, kb, km, kv = jax.random.split(kk, 4)
        p[f"bn{i}_g"] = 1.0 + 0.1 * jax.random.normal(kg, (hidden_dim,), jnp.float32)
        p[f"bn{i}_b"] = 0.1 * jax.random.normal(kb, (hidden_dim,), jnp.float32)
        p[f"bn{i}_m"] = 0.05 * jax.random.normal(km, (hidden_dim,), jnp.float32)
        p[f"bn{i}_v"] = 1.0 + 0.1 * jax.random.uniform(kv, (hidden_dim,), jnp.float32)
    return p


def reference_forward(x, params):
    """Pure-JAX f32 reference (eval-mode BN, no dropout)."""
    h = x
    for i in range(1, 5):
        y = h @ params[f"w{i}"] + params[f"b{i}"]
        scale = params[f"bn{i}_g"] / jnp.sqrt(params[f"bn{i}_v"] + BN_EPS)
        shift = params[f"bn{i}_b"] - params[f"bn{i}_m"] * scale
        y = y * scale + shift
        h = jnp.where(y > 0, y, NEG_SLOPE * y)
    logits = h @ params["wa"] + params["ba"]
    probs = jax.nn.softmax(logits, axis=-1)
    value = h @ params["wv"] + params["bv"]
    return probs, value


if __name__ == "__main__":
    B, INPUT_DIM, OUTPUT_DIM, HIDDEN_DIM = 8, 32, 8, 128

    key = jax.random.PRNGKey(0)
    k_x, k_p = jax.random.split(key)
    x = jax.random.normal(k_x, (B, INPUT_DIM), jnp.float32)
    params = init_params(k_p, INPUT_DIM, OUTPUT_DIM, HIDDEN_DIM)

    probs, value = poker_small_model_forward(x, params)
    probs = jax.block_until_ready(probs)
    value = jax.block_until_ready(value)

    ref_probs, ref_value = reference_forward(x, params)
    assert probs.shape == (B, OUTPUT_DIM) and value.shape == (B, 1)
    # bf16 weights/activations/output -> loosened tolerances vs f32 reference.
    assert jnp.allclose(probs, ref_probs, atol=3e-2, rtol=3e-2)
    assert jnp.allclose(value, ref_value, atol=3e-2, rtol=3e-2)
    # Softmax normalisation is exact in f32; only the bf16 output quantization
    # perturbs the row sums (<< 1e-2).
    assert jnp.allclose(jnp.sum(probs, axis=-1), 1.0, atol=1e-2)

    print("KERNEL_OK")
</pallas_src>

<mosaic_0001>
module attributes {stable_mosaic.version = 11 : i64} {
  func.func @_poker_kernel(%arg0: i32, %arg1: memref<8x32xbf16, #tpu.memory_space<vmem>>, %arg2: memref<32x128xbf16, #tpu.memory_space<vmem>>, %arg3: memref<1x128xbf16, #tpu.memory_space<vmem>>, %arg4: memref<128x128xbf16, #tpu.memory_space<vmem>>, %arg5: memref<1x128xbf16, #tpu.memory_space<vmem>>, %arg6: memref<128x128xbf16, #tpu.memory_space<vmem>>, %arg7: memref<1x128xbf16, #tpu.memory_space<vmem>>, %arg8: memref<128x128xbf16, #tpu.memory_space<vmem>>, %arg9: memref<1x128xbf16, #tpu.memory_space<vmem>>, %arg10: memref<128x128xbf16, #tpu.memory_space<vmem>>, %arg11: memref<1x128xf32, #tpu.memory_space<vmem>>, %arg12: memref<8x128xbf16, #tpu.memory_space<vmem>>) attributes {dimension_semantics = [#tpu.dimension_semantics<parallel>], iteration_bounds = array<i64: 1>, scalar_prefetch = 0 : i64, scratch_operands = 0 : i64, tpu.core_type = #tpu.core_type<tc>, window_params = [{transform_indices = @transform_0, window_bounds = array<i64: 8, 32>}, {pipeline_mode = #tpu.pipeline_mode<synchronous>, transform_indices = @transform_1, window_bounds = array<i64: 32, 128>}, {pipeline_mode = #tpu.pipeline_mode<synchronous>, transform_indices = @transform_2, window_bounds = array<i64: 1, 128>}, {pipeline_mode = #tpu.pipeline_mode<synchronous>, transform_indices = @transform_3, window_bounds = array<i64: 128, 128>}, {pipeline_mode = #tpu.pipeline_mode<synchronous>, transform_indices = @transform_4, window_bounds = array<i64: 1, 128>}, {pipeline_mode = #tpu.pipeline_mode<synchronous>, transform_indices = @transform_5, window_bounds = array<i64: 128, 128>}, {pipeline_mode = #tpu.pipeline_mode<synchronous>, transform_indices = @transform_6, window_bounds = array<i64: 1, 128>}, {pipeline_mode = #tpu.pipeline_mode<synchronous>, transform_indices = @transform_7, window_bounds = array<i64: 128, 128>}, {pipeline_mode = #tpu.pipeline_mode<synchronous>, transform_indices = @transform_8, window_bounds = array<i64: 1, 128>}, {pipeline_mode = #tpu.pipeline_mode<synchronous>, transform_indices = @transform_9, window_bounds = array<i64: 128, 128>}, {pipeline_mode = #tpu.pipeline_mode<synchronous>, transform_indices = @transform_10, window_bounds = array<i64: 1, 128>}, {transform_indices = @transform_11, window_bounds = array<i64: 8, 128>}]} {
    %c0 = arith.constant 0 : index
    %c0_0 = arith.constant 0 : index
    %0 = vector.load %arg1[%c0, %c0_0] : memref<8x32xbf16, #tpu.memory_space<vmem>>, vector<8x32xbf16>
    %c0_1 = arith.constant 0 : index
    %c0_2 = arith.constant 0 : index
    %1 = vector.load %arg2[%c0_1, %c0_2] : memref<32x128xbf16, #tpu.memory_space<vmem>>, vector<32x128xbf16>
    %cst = arith.constant dense<0.000000e+00> : vector<8x128xf32>
    %2 = tpu.matmul %0, %1, %cst {dimension_numbers = #tpu.dot_dimension_numbers<[1], [0], [0], [1], [0, 0, 1, 1], [], []>} : vector<8x32xbf16>, vector<32x128xbf16>, vector<8x128xf32> -> vector<8x128xf32>
    %3 = arith.truncf %2 : vector<8x128xf32> to vector<8x128xbf16>
    %c0_3 = arith.constant 0 : index
    %c0_4 = arith.constant 0 : index
    %4 = vector.load %arg3[%c0_3, %c0_4] : memref<1x128xbf16, #tpu.memory_space<vmem>>, vector<1x128xbf16>
    %5 = vector.broadcast %4 : vector<1x128xbf16> to vector<8x128xbf16>
    %6 = arith.addf %3, %5 : vector<8x128xbf16>
    %cst_5 = arith.constant 1.000980e-02 : bf16
    %7 = vector.broadcast %cst_5 : bf16 to vector<8x128xbf16>
    %8 = arith.mulf %7, %6 : vector<8x128xbf16>
    %9 = arith.maximumf %6, %8 : vector<8x128xbf16>
    %c0_6 = arith.constant 0 : index
    %c0_7 = arith.constant 0 : index
    %10 = vector.load %arg4[%c0_6, %c0_7] : memref<128x128xbf16, #tpu.memory_space<vmem>>, vector<128x128xbf16>
    %cst_8 = arith.constant dense<0.000000e+00> : vector<8x128xf32>
    %11 = tpu.matmul %9, %10, %cst_8 {dimension_numbers = #tpu.dot_dimension_numbers<[1], [0], [0], [1], [0, 0, 1, 1], [], []>} : vector<8x128xbf16>, vector<128x128xbf16>, vector<8x128xf32> -> vector<8x128xf32>
    %12 = arith.truncf %11 : vector<8x128xf32> to vector<8x128xbf16>
    %c0_9 = arith.constant 0 : index
    %c0_10 = arith.constant 0 : index
    %13 = vector.load %arg5[%c0_9, %c0_10] : memref<1x128xbf16, #tpu.memory_space<vmem>>, vector<1x128xbf16>
    %14 = vector.broadcast %13 : vector<1x128xbf16> to vector<8x128xbf16>
    %15 = arith.addf %12, %14 : vector<8x128xbf16>
    %cst_11 = arith.constant 1.000980e-02 : bf16
    %16 = vector.broadcast %cst_11 : bf16 to vector<8x128xbf16>
    %17 = arith.mulf %16, %15 : vector<8x128xbf16>
    %18 = arith.maximumf %15, %17 : vector<8x128xbf16>
    %c0_12 = arith.constant 0 : index
    %c0_13 = arith.constant 0 : index
    %19 = vector.load %arg6[%c0_12, %c0_13] : memref<128x128xbf16, #tpu.memory_space<vmem>>, vector<128x128xbf16>
    %cst_14 = arith.constant dense<0.000000e+00> : vector<8x128xf32>
    %20 = tpu.matmul %18, %19, %cst_14 {dimension_numbers = #tpu.dot_dimension_numbers<[1], [0], [0], [1], [0, 0, 1, 1], [], []>} : vector<8x128xbf16>, vector<128x128xbf16>, vector<8x128xf32> -> vector<8x128xf32>
    %21 = arith.truncf %20 : vector<8x128xf32> to vector<8x128xbf16>
    %c0_15 = arith.constant 0 : index
    %c0_16 = arith.constant 0 : index
    %22 = vector.load %arg7[%c0_15, %c0_16] : memref<1x128xbf16, #tpu.memory_space<vmem>>, vector<1x128xbf16>
    %23 = vector.broadcast %22 : vector<1x128xbf16> to vector<8x128xbf16>
    %24 = arith.addf %21, %23 : vector<8x128xbf16>
    %cst_17 = arith.constant 1.000980e-02 : bf16
    %25 = vector.broadcast %cst_17 : bf16 to vector<8x128xbf16>
    %26 = arith.mulf %25, %24 : vector<8x128xbf16>
    %27 = arith.maximumf %24, %26 : vector<8x128xbf16>
    %c0_18 = arith.constant 0 : index
    %c0_19 = arith.constant 0 : index
    %28 = vector.load %arg8[%c0_18, %c0_19] : memref<128x128xbf16, #tpu.memory_space<vmem>>, vector<128x128xbf16>
    %cst_20 = arith.constant dense<0.000000e+00> : vector<8x128xf32>
    %29 = tpu.matmul %27, %28, %cst_20 {dimension_numbers = #tpu.dot_dimension_numbers<[1], [0], [0], [1], [0, 0, 1, 1], [], []>} : vector<8x128xbf16>, vector<128x128xbf16>, vector<8x128xf32> -> vector<8x128xf32>
    %30 = arith.truncf %29 : vector<8x128xf32> to vector<8x128xbf16>
    %c0_21 = arith.constant 0 : index
    %c0_22 = arith.constant 0 : index
    %31 = vector.load %arg9[%c0_21, %c0_22] : memref<1x128xbf16, #tpu.memory_space<vmem>>, vector<1x128xbf16>
    %32 = vector.broadcast %31 : vector<1x128xbf16> to vector<8x128xbf16>
    %33 = arith.addf %30, %32 : vector<8x128xbf16>
    %cst_23 = arith.constant 1.000980e-02 : bf16
    %34 = vector.broadcast %cst_23 : bf16 to vector<8x128xbf16>
    %35 = arith.mulf %34, %33 : vector<8x128xbf16>
    %36 = arith.maximumf %33, %35 : vector<8x128xbf16>
    %c0_24 = arith.constant 0 : index
    %c0_25 = arith.constant 0 : index
    %37 = vector.load %arg10[%c0_24, %c0_25] : memref<128x128xbf16, #tpu.memory_space<vmem>>, vector<128x128xbf16>
    %cst_26 = arith.constant dense<0.000000e+00> : vector<8x128xf32>
    %38 = tpu.matmul %36, %37, %cst_26 {dimension_numbers = #tpu.dot_dimension_numbers<[1], [0], [0], [1], [0, 0, 1, 1], [], []>} : vector<8x128xbf16>, vector<128x128xbf16>, vector<8x128xf32> -> vector<8x128xf32>
    %c0_27 = arith.constant 0 : index
    %c0_28 = arith.constant 0 : index
    %39 = vector.load %arg11[%c0_27, %c0_28] : memref<1x128xf32, #tpu.memory_space<vmem>>, vector<1x128xf32>
    %40 = vector.broadcast %39 : vector<1x128xf32> to vector<8x128xf32>
    %41 = arith.addf %38, %40 : vector<8x128xf32>
    %42 = tpu.iota {dimensions = array<i32: 1>} : vector<8x128xi32>
    %c8_i32 = arith.constant 8 : i32
    %43 = vector.broadcast %c8_i32 : i32 to vector<8x128xi32>
    %44 = arith.cmpi slt, %42, %43 : vector<8x128xi32>
    %cst_29 = arith.constant -1.000000e+30 : f32
    %45 = vector.broadcast %cst_29 : f32 to vector<8x128xf32>
    %46 = arith.select %44, %41, %45 : vector<8x128xi1>, vector<8x128xf32>
    %cst_30 = arith.constant dense<0xFF800000> : vector<8xf32>
    %47 = vector.multi_reduction <maximumf>, %46, %cst_30 [1] : vector<8x128xf32> to vector<8xf32>
    %48 = vector.shape_cast %47 : vector<8xf32> to vector<8x1xf32>
    %49 = vector.broadcast %48 : vector<8x1xf32> to vector<8x128xf32>
    %50 = arith.subf %46, %49 : vector<8x128xf32>
    %51 = math.exp %50 : vector<8x128xf32>
    %cst_31 = arith.constant dense<0.000000e+00> : vector<8xf32>
    %52 = vector.multi_reduction <add>, %51, %cst_31 [1] : vector<8x128xf32> to vector<8xf32>
    %53 = vector.shape_cast %52 : vector<8xf32> to vector<8x1xf32>
    %54 = vector.broadcast %53 : vector<8x1xf32> to vector<8x128xf32>
    %55 = arith.divf %51, %54 : vector<8x128xf32>
    %c8_i32_32 = arith.constant 8 : i32
    %56 = vector.broadcast %c8_i32_32 : i32 to vector<8x128xi32>
    %57 = arith.cmpi eq, %42, %56 : vector<8x128xi32>
    %cst_33 = arith.constant 0.000000e+00 : f32
    %58 = vector.broadcast %cst_33 : f32 to vector<8x128xf32>
    %59 = arith.select %57, %41, %58 : vector<8x128xi1>, vector<8x128xf32>
    %60 = arith.select %44, %55, %59 : vector<8x128xi1>, vector<8x128xf32>
    %61 = arith.truncf %60 : vector<8x128xf32> to vector<8x128xbf16>
    %c0_34 = arith.constant 0 : index
    %c0_35 = arith.constant 0 : index
    %62 = vector.load %arg12[%c0_34, %c0_35] : memref<8x128xbf16, #tpu.memory_space<vmem>>, vector<8x128xbf16>
    tpu.vector_store %arg12[%c0_34, %c0_35], %61 {strides = array<i32>} : memref<8x128xbf16, #tpu.memory_space<vmem>>, vector<8x128xbf16>,
    return
  }
  func.func @transform_0(%arg0: i32) -> (i32, i32) {
    %c0_i32 = arith.constant 0 : i32
    %c0_i32_0 = arith.constant 0 : i32
    return %arg0, %c0_i32 : i32, i32
  }
  func.func @transform_1(%arg0: i32) -> (i32, i32) {
    %c0_i32 = arith.constant 0 : i32
    %c0_i32_0 = arith.constant 0 : i32
    %c0_i32_1 = arith.constant 0 : i32
    return %c0_i32, %c0_i32_0 : i32, i32
  }
  func.func @transform_2(%arg0: i32) -> (i32, i32) {
    %c0_i32 = arith.constant 0 : i32
    %c0_i32_0 = arith.constant 0 : i32
    %c0_i32_1 = arith.constant 0 : i32
    return %c0_i32, %c0_i32_0 : i32, i32
  }
  func.func @transform_3(%arg0: i32) -> (i32, i32) {
    %c0_i32 = arith.constant 0 : i32
    %c0_i32_0 = arith.constant 0 : i32
    %c0_i32_1 = arith.constant 0 : i32
    return %c0_i32, %c0_i32_0 : i32, i32
  }
  func.func @transform_4(%arg0: i32) -> (i32, i32) {
    %c0_i32 = arith.constant 0 : i32
    %c0_i32_0 = arith.constant 0 : i32
    %c0_i32_1 = arith.constant 0 : i32
    return %c0_i32, %c0_i32_0 : i32, i32
  }
  func.func @transform_5(%arg0: i32) -> (i32, i32) {
    %c0_i32 = arith.constant 0 : i32
    %c0_i32_0 = arith.constant 0 : i32
    %c0_i32_1 = arith.constant 0 : i32
    return %c0_i32, %c0_i32_0 : i32, i32
  }
  func.func @transform_6(%arg0: i32) -> (i32, i32) {
    %c0_i32 = arith.constant 0 : i32
    %c0_i32_0 = arith.constant 0 : i32
    %c0_i32_1 = arith.constant 0 : i32
    return %c0_i32, %c0_i32_0 : i32, i32
  }
  func.func @transform_7(%arg0: i32) -> (i32, i32) {
    %c0_i32 = arith.constant 0 : i32
    %c0_i32_0 = arith.constant 0 : i32
    %c0_i32_1 = arith.constant 0 : i32
    return %c0_i32, %c0_i32_0 : i32, i32
  }
  func.func @transform_8(%arg0: i32) -> (i32, i32) {
    %c0_i32 = arith.constant 0 : i32
    %c0_i32_0 = arith.constant 0 : i32
    %c0_i32_1 = arith.constant 0 : i32
    return %c0_i32, %c0_i32_0 : i32, i32
  }
  func.func @transform_9(%arg0: i32) -> (i32, i32) {
    %c0_i32 = arith.constant 0 : i32
    %c0_i32_0 = arith.constant 0 : i32
    %c0_i32_1 = arith.constant 0 : i32
    return %c0_i32, %c0_i32_0 : i32, i32
  }
  func.func @transform_10(%arg0: i32) -> (i32, i32) {
    %c0_i32 = arith.constant 0 : i32
    %c0_i32_0 = arith.constant 0 : i32
    %c0_i32_1 = arith.constant 0 : i32
    return %c0_i32, %c0_i32_0 : i32, i32
  }
  func.func @transform_11(%arg0: i32) -> (i32, i32) {
    %c0_i32 = arith.constant 0 : i32
    %c0_i32_0 = arith.constant 0 : i32
    return %arg0, %c0_i32 : i32, i32
  }
}

</mosaic_0001>

<llo_original>
// kernel: tpu_custom_call.1
$region0: #{tpu_custom_call.1}
  #allocation0 [shape = 'u32[]', space=smem, size = 0x4, offset = 0x4, fixed_abs, tag = 'smem constant byte address 0x4 - core index']
  #allocation1 [shape = 'u32[72,128]{1,0:T(1,128)}', space=vmem, size = 0x9000, scoped, tag = 'internal scratch']
  %s0 = inlined_call_operand.hbm [shape: bf16[8,32], index: 0, kind: input, shape index: {}]
  %s1 = inlined_call_operand.hbm [shape: bf16[32,128], index: 1, kind: input, shape index: {}]
  %s2 = inlined_call_operand.vmem [shape: bf16[1,128], index: 2, kind: input, shape index: {}]
  %s3 = inlined_call_operand.hbm [shape: bf16[128,128], index: 3, kind: input, shape index: {}]
  %s4 = inlined_call_operand.vmem [shape: bf16[1,128], index: 4, kind: input, shape index: {}]
  %s5 = inlined_call_operand.hbm [shape: bf16[128,128], index: 5, kind: input, shape index: {}]
  %s6 = inlined_call_operand.vmem [shape: bf16[1,128], index: 6, kind: input, shape index: {}]
  %s7 = inlined_call_operand.hbm [shape: bf16[128,128], index: 7, kind: input, shape index: {}]
  %s8 = inlined_call_operand.vmem [shape: bf16[1,128], index: 8, kind: input, shape index: {}]
  %s9 = inlined_call_operand.hbm [shape: bf16[128,128], index: 9, kind: input, shape index: {}]
  %s10 = inlined_call_operand.vmem [shape: f32[1,128], index: 10, kind: input, shape index: {}]
  %s11 = inlined_call_operand.hbm [shape: bf16[8,128], index: 11, kind: output, shape index: {}]
  %s12 = sld [smem:[#allocation0]]
  $region78: #{tpu_custom_call.1} parent=0
    _
  %s14 = ssub.s32 1, %s12
  %s15 = scalar_select 0, %s14, %s12
  $region1: #{tpu_custom_call.1} parent=0
    #allocation2 [shape = 'u8[2048]{0}', space=vmem, size = 0x800, scoped, tag = 'input window, operand 0, single buffered']
    #allocation3 [shape = 's32[1]{0}', space=sflag, size = 0x4, scoped, tag = 'scoped memory for tpu_custom_call.1']
    #allocation4 [shape = 's32[1]{0}', space=sflag, size = 0x4, scoped, tag = 'scoped memory for tpu_custom_call.1']
    #allocation5 [shape = 'u8[8192]{0}', space=vmem, size = 0x2000, scoped, tag = 'input window, operand 1, single buffered']
    #allocation6 [shape = 's32[1]{0}', space=sflag, size = 0x4, scoped, tag = 'scoped memory for tpu_custom_call.1']
    #allocation7 [shape = 'u8[32768]{0}', space=vmem, size = 0x8000, scoped, tag = 'input window, operand 3, single buffered']
    #allocation8 [shape = 'u8[32768]{0}', space=vmem, size = 0x8000, scoped, tag = 'input window, operand 5, single buffered']
    #allocation9 [shape = 's32[1]{0}', space=sflag, size = 0x4, scoped, tag = 'scoped memory for tpu_custom_call.1']
    #allocation10 [shape = 'u8[32768]{0}', space=vmem, size = 0x8000, scoped, tag = 'input window, operand 7, single buffered']
    #allocation11 [shape = 'u8[32768]{0}', space=vmem, size = 0x8000, scoped, tag = 'input window, operand 9, single buffered']
    #allocation12 [shape = 's32[1]{0}', space=sflag, size = 0x4, scoped, tag = 'scoped memory for tpu_custom_call.1']
    #allocation13 [shape = 'u8[2048]{0}', space=vmem, size = 0x800, scoped, tag = 'output window, operand 0, single buffered']
    %16 = vsyncpa [#allocation3], 0
    %17 = vsyncpa [#allocation6], 0
    %18 = vsyncpa [#allocation9], 0
    %19 = vsyncpa [#allocation12], 0
    %20 = vsyncpa [#allocation4], 0
    // Predicated region
    $region2: #{tpu_custom_call.1} parent=1 // pred_check
      _
    $region3: #{tpu_custom_call.1} parent=1 // pred_check_branch
      %22 = sbr.rel (0) target = $region5
    $region4: #{tpu_custom_call.1} parent=1 // pred_region
      %24 = vsyncadd [#allocation3], 0
      %s26 = sshll.u32 %s0, 4
      %s27 = int_to_ptr.hbm [resolvable:$true] %s26
      %s28 = sshll.u32 [#allocation2], 4
      %s29 = int_to_ptr.vmem [resolvable:$true] %s28
      %31 = dma.hbm_to_vmem [thread:$0]  %s27, 64, %s29, [#allocation3]
    $region5: #{tpu_custom_call.1} parent=1 // pred_fallthru
      _
    // Predicated region
    $region6: #{tpu_custom_call.1} parent=1 // pred_check
      _
    $region7: #{tpu_custom_call.1} parent=1 // pred_check_branch
      %33 = sbr.rel (0) target = $region9
    $region8: #{tpu_custom_call.1} parent=1 // pred_region
      %35 = vsyncadd [#allocation6], 0
      %s36 = sshll.u32 %s1, 4
      %s37 = int_to_ptr.hbm [resolvable:$true] %s36
      %s38 = sshll.u32 [#allocation5], 4
      %s39 = int_to_ptr.vmem [resolvable:$true] %s38
      %44 = dma.hbm_to_vmem [thread:$0]  %s37, 256, %s39, [#allocation6], 64, 64, 4
    $region9: #{tpu_custom_call.1} parent=1 // pred_fallthru
      _
    // Predicated region
    $region10: #{tpu_custom_call.1} parent=1 // pred_check
      _
    $region11: #{tpu_custom_call.1} parent=1 // pred_check_branch
      %46 = sbr.rel (0) target = $region13
    $region12: #{tpu_custom_call.1} parent=1 // pred_region
      _
    $region13: #{tpu_custom_call.1} parent=1 // pred_fallthru
      _
    // Predicated region
    $region14: #{tpu_custom_call.1} parent=1 // pred_check
      _
    $region15: #{tpu_custom_call.1} parent=1 // pred_check_branch
      %48 = sbr.rel (0) target = $region17
    $region16: #{tpu_custom_call.1} parent=1 // pred_region
      %50 = vsyncadd [#allocation6], 0
      %s51 = sshll.u32 %s3, 4
      %s52 = int_to_ptr.hbm [resolvable:$true] %s51
      %s53 = sshll.u32 [#allocation7], 4
      %s54 = int_to_ptr.vmem [resolvable:$true] %s53
      %59 = dma.hbm_to_vmem [thread:$0]  %s52, 1024, %s54, [#allocation6], 64, 64, 4
    $region17: #{tpu_custom_call.1} parent=1 // pred_fallthru
      _
    // Predicated region
    $region18: #{tpu_custom_call.1} parent=1 // pred_check
      _
    $region19: #{tpu_custom_call.1} parent=1 // pred_check_branch
      %61 = sbr.rel (0) target = $region21
    $region20: #{tpu_custom_call.1} parent=1 // pred_region
      _
    $region21: #{tpu_custom_call.1} parent=1 // pred_fallthru
      _
    // Predicated region
    $region22: #{tpu_custom_call.1} parent=1 // pred_check
      _
    $region23: #{tpu_custom_call.1} parent=1 // pred_check_branch
      %63 = sbr.rel (0) target = $region25
    $region24: #{tpu_custom_call.1} parent=1 // pred_region
      %65 = vsyncadd [#allocation9], 0
      %s66 = sshll.u32 %s5, 4
      %s67 = int_to_ptr.hbm [resolvable:$true] %s66
      %s68 = sshll.u32 [#allocation8], 4
      %s69 = int_to_ptr.vmem [resolvable:$true] %s68
      %74 = dma.hbm_to_vmem [thread:$0]  %s67, 1024, %s69, [#allocation9], 64, 64, 4
    $region25: #{tpu_custom_call.1} parent=1 // pred_fallthru
      _
    // Predicated region
    $region26: #{tpu_custom_call.1} parent=1 // pred_check
      _
    $region27: #{tpu_custom_call.1} parent=1 // pred_check_branch
      %76 = sbr.rel (0) target = $region29
    $region28: #{tpu_custom_call.1} parent=1 // pred_region
      _
    $region29: #{tpu_custom_call.1} parent=1 // pred_fallthru
      _
    // Predicated region
    $region30: #{tpu_custom_call.1} parent=1 // pred_check
      _
    $region31: #{tpu_custom_call.1} parent=1 // pred_check_branch
      %78 = sbr.rel (0) target = $region33
    $region32: #{tpu_custom_call.1} parent=1 // pred_region
      %80 = vsyncadd [#allocation9], 0
      %s81 = sshll.u32 %s7, 4
      %s82 = int_to_ptr.hbm [resolvable:$true] %s81
      %s83 = sshll.u32 [#allocation10], 4
      %s84 = int_to_ptr.vmem [resolvable:$true] %s83
      %89 = dma.hbm_to_vmem [thread:$0]  %s82, 1024, %s84, [#allocation9], 64, 64, 4
    $region33: #{tpu_custom_call.1} parent=1 // pred_fallthru
      _
    // Predicated region
    $region34: #{tpu_custom_call.1} parent=1 // pred_check
      _
    $region35: #{tpu_custom_call.1} parent=1 // pred_check_branch
      %91 = sbr.rel (0) target = $region37
    $region36: #{tpu_custom_call.1} parent=1 // pred_region
      _
    $region37: #{tpu_custom_call.1} parent=1 // pred_fallthru
      _
    // Predicated region
    $region38: #{tpu_custom_call.1} parent=1 // pred_check
      _
    $region39: #{tpu_custom_call.1} parent=1 // pred_check_branch
      %93 = sbr.rel (0) target = $region41
    $region40: #{tpu_custom_call.1} parent=1 // pred_region
      %95 = vsyncadd [#allocation12], 0
      %s96 = sshll.u32 %s9, 4
      %s97 = int_to_ptr.hbm [resolvable:$true] %s96
      %s98 = sshll.u32 [#allocation11], 4
      %s99 = int_to_ptr.vmem [resolvable:$true] %s98
      %104 = dma.hbm_to_vmem [thread:$0]  %s97, 1024, %s99, [#allocation12], 64, 64, 4
    $region41: #{tpu_custom_call.1} parent=1 // pred_fallthru
      _
    // Predicated region
    $region42: #{tpu_custom_call.1} parent=1 // pred_check
      _
    $region43: #{tpu_custom_call.1} parent=1 // pred_check_branch
      %106 = sbr.rel (0) target = $region45
    $region44: #{tpu_custom_call.1} parent=1 // pred_region
      _
    $region45: #{tpu_custom_call.1} parent=1 // pred_fallthru
      _
    // Predicated region
    $region46: #{tpu_custom_call.1} parent=1 // pred_check
      _
    $region47: #{tpu_custom_call.1} parent=1 // pred_check_branch
      %108 = sbr.rel (0) target = $region49
    $region48: #{tpu_custom_call.1} parent=1 // pred_region
      %110 = dma.done [#allocation3], 64
    $region49: #{tpu_custom_call.1} parent=1 // pred_fallthru
      _
    // Predicated region
    $region50: #{tpu_custom_call.1} parent=1 // pred_check
      _
    $region51: #{tpu_custom_call.1} parent=1 // pred_check_branch
      %112 = sbr.rel (0) target = $region53
    $region52: #{tpu_custom_call.1} parent=1 // pred_region
      %114 = dma.done [#allocation6], 256
    $region53: #{tpu_custom_call.1} parent=1 // pred_fallthru
      _
    // Predicated region
    $region54: #{tpu_custom_call.1} parent=1 // pred_check
      _
    $region55: #{tpu_custom_call.1} parent=1 // pred_check_branch
      %116 = sbr.rel (0) target = $region57
    $region56: #{tpu_custom_call.1} parent=1 // pred_region
      %118 = dma.done [#allocation6], 1024
    $region57: #{tpu_custom_call.1} parent=1 // pred_fallthru
      _
    // Predicated region
    $region58: #{tpu_custom_call.1} parent=1 // pred_check
      _
    $region59: #{tpu_custom_call.1} parent=1 // pred_check_branch
      %120 = sbr.rel (0) target = $region61
    $region60: #{tpu_custom_call.1} parent=1 // pred_region
      %122 = dma.done [#allocation9], 1024
    $region61: #{tpu_custom_call.1} parent=1 // pred_fallthru
      _
    // Predicated region
    $region62: #{tpu_custom_call.1} parent=1 // pred_check
      _
    $region63: #{tpu_custom_call.1} parent=1 // pred_check_branch
      %124 = sbr.rel (0) target = $region65
    $region64: #{tpu_custom_call.1} parent=1 // pred_region
      %126 = dma.done [#allocation9], 1024
    $region65: #{tpu_custom_call.1} parent=1 // pred_fallthru
      _
    // Predicated region
    $region66: #{tpu_custom_call.1} parent=1 // pred_check
      _
    $region67: #{tpu_custom_call.1} parent=1 // pred_check_branch
      %128 = sbr.rel (0) target = $region69
    $region68: #{tpu_custom_call.1} parent=1 // pred_region
      %130 = dma.done [#allocation12], 1024
    $region69: #{tpu_custom_call.1} parent=1 // pred_fallthru
      _
    %v132 = vld [vmem:[#allocation2] sm:$0xf]
    %v133 = vld [vmem:[#allocation5] sm:$0xf]
    %v134 = vld [vmem:[#allocation5 + $0x4] sm:$0xf]
    %v135 = vld [vmem:[#allocation5 + $0x8] sm:$0xf]
    %v136 = vld [vmem:[#allocation5 + $0xc] sm:$0xf]
    %v141 = vunpack.c.l.b16 %v133
    %v142 = vunpack.c.l.b16 %v134
    %v143 = vunpack.c.l.b16 %v135
    %v144 = vunpack.c.l.b16 %v136
    %v145 = vpack.c.b16 %v142, %v141
    %v146 = vpack.c.b16 %v144, %v143
    %vm149 = vcmask 261120
    %v151 = vsel %vm149, %v132, 0
    %153 = vmatpush.bf16.msra.mxu0 0
    %154 = vmatpush.bf16.msra.mxu0 0
    %155 = vmatpush.bf16.msra.mxu0 0
    %156 = vmatpush.bf16.msra.mxu0 0
    %157 = vmatpush.bf16.msra.mxu0 0
    %158 = vmatpush.bf16.msra.mxu0 0
    %159 = vmatpush.bf16.msra.mxu0 %v146
    %160 = vmatpush.bf16.msra.mxu0 %v145
    %161 = vmatmul.bf16.gmra.mxu0 %v151
    %v162 = vpop.f32.mrf.mxu0
    %v163 = vadd.f32 0.0, %v162
    %v164 = vpop.f32.mrf.mxu0
    %165 = vdwg.mxu0
    %v166 = vpack.c.bf16 %v163, %v163
    %v167 = vld [vmem:[%s2] sm:$0x1]
    %v169 = vpack.i.b16 %v167, %v167
    %v171 = vperm.slane %v169, 0
    %v172 = vunpack.c.l.bf16 %v166
    %v173 = vunpack.c.l.bf16 %v171
    %v174 = vadd.f32 %v172, %v173
    %v175 = vpack.c.bf16 %v174, %v174
    %v176 = vunpack.c.l.bf16 %v175
    %v177 = vmul.f32 %v176, 0.010009766
    %v178 = vpack.c.bf16 %v177, %v177
    %v179 = vunpack.c.l.bf16 %v178
    %v180 = vmax.f32 %v176, %v179
    %v181 = vpack.c.bf16 %v180, %v180
    %v182 = vld [vmem:[#allocation7] sm:$0xf]
    %v183 = vld [vmem:[#allocation7 + $0x4] sm:$0xf]
    %v184 = vld [vmem:[#allocation7 + $0x8] sm:$0xf]
    %v185 = vld [vmem:[#allocation7 + $0xc] sm:$0xf]
    %v186 = vld [vmem:[#allocation7 + $0x10] sm:$0xf]
    %v187 = vld [vmem:[#allocation7 + $0x14] sm:$0xf]
    %v188 = vld [vmem:[#allocation7 + $0x18] sm:$0xf]
    %v189 = vld [vmem:[#allocation7 + $0x1c] sm:$0xf]
    %v190 = vld [vmem:[#allocation7 + $0x20] sm:$0xf]
    %v191 = vld [vmem:[#allocation7 + $0x24] sm:$0xf]
    %v192 = vld [vmem:[#allocation7 + $0x28] sm:$0xf]
    %v193 = vld [vmem:[#allocation7 + $0x2c] sm:$0xf]
    %v194 = vld [vmem:[#allocation7 + $0x30] sm:$0xf]
    %v195 = vld [vmem:[#allocation7 + $0x34] sm:$0xf]
    %v196 = vld [vmem:[#allocation7 + $0x38] sm:$0xf]
    %v197 = vld [vmem:[#allocation7 + $0x3c] sm:$0xf]
    %v214 = vunpack.c.l.b16 %v182
    %v215 = vunpack.c.l.b16 %v183
    %v216 = vunpack.c.l.b16 %v184
    %v217 = vunpack.c.l.b16 %v185
    %v218 = vunpack.c.l.b16 %v186
    %v219 = vunpack.c.l.b16 %v187
    %v220 = vunpack.c.l.b16 %v188
    %v221 = vunpack.c.l.b16 %v189
    %v222 = vunpack.c.l.b16 %v190
    %v223 = vunpack.c.l.b16 %v191
    %v224 = vunpack.c.l.b16 %v192
    %v225 = vunpack.c.l.b16 %v193
    %v226 = vunpack.c.l.b16 %v194
    %v227 = vunpack.c.l.b16 %v195
    %v228 = vunpack.c.l.b16 %v196
    %v229 = vunpack.c.l.b16 %v197
    %v230 = vpack.c.b16 %v215, %v214
    %v231 = vpack.c.b16 %v217, %v216
    %v232 = vpack.c.b16 %v219, %v218
    %v233 = vpack.c.b16 %v221, %v220
    %v234 = vpack.c.b16 %v223, %v222
    %v235 = vpack.c.b16 %v225, %v224
    %v236 = vpack.c.b16 %v227, %v226
    %v237 = vpack.c.b16 %v229, %v228
    %246 = vmatpush.bf16.msra.mxu0 %v237
    %247 = vmatpush.bf16.msra.mxu0 %v236
    %248 = vmatpush.bf16.msra.mxu0 %v235
    %249 = vmatpush.bf16.msra.mxu0 %v234
    %250 = vmatpush.bf16.msra.mxu0 %v233
    %251 = vmatpush.bf16.msra.mxu0 %v232
    %252 = vmatpush.bf16.msra.mxu0 %v231
    %253 = vmatpush.bf16.msra.mxu0 %v230
    %254 = vmatmul.bf16.gmra.mxu0 %v181
    %v255 = vpop.f32.mrf.mxu0
    %v256 = vadd.f32 0.0, %v255
    %v257 = vpop.f32.mrf.mxu0
    %258 = vdwg.mxu0
    %v259 = vpack.c.bf16 %v256, %v256
    %v260 = vld [vmem:[%s4] sm:$0x1]
    %v262 = vpack.i.b16 %v260, %v260
    %v264 = vperm.slane %v262, 0
    %v265 = vunpack.c.l.bf16 %v259
    %v266 = vunpack.c.l.bf16 %v264
    %v267 = vadd.f32 %v265, %v266
    %v268 = vpack.c.bf16 %v267, %v267
    %v269 = vunpack.c.l.bf16 %v268
    %v270 = vmul.f32 %v269, 0.010009766
    %v271 = vpack.c.bf16 %v270, %v270
    %v272 = vunpack.c.l.bf16 %v271
    %v273 = vmax.f32 %v269, %v272
    %v274 = vpack.c.bf16 %v273, %v273
    %v275 = vld [vmem:[#allocation8] sm:$0xf]
    %v276 = vld [vmem:[#allocation8 + $0x4] sm:$0xf]
    %v277 = vld [vmem:[#allocation8 + $0x8] sm:$0xf]
    %v278 = vld [vmem:[#allocation8 + $0xc] sm:$0xf]
    %v279 = vld [vmem:[#allocation8 + $0x10] sm:$0xf]
    %v280 = vld [vmem:[#allocation8 + $0x14] sm:$0xf]
    %v281 = vld [vmem:[#allocation8 + $0x18] sm:$0xf]
    %v282 = vld [vmem:[#allocation8 + $0x1c] sm:$0xf]
    %v283 = vld [vmem:[#allocation8 + $0x20] sm:$0xf]
    %v284 = vld [vmem:[#allocation8 + $0x24] sm:$0xf]
    %v285 = vld [vmem:[#allocation8 + $0x28] sm:$0xf]
    %v286 = vld [vmem:[#allocation8 + $0x2c] sm:$0xf]
    %v287 = vld [vmem:[#allocation8 + $0x30] sm:$0xf]
    %v288 = vld [vmem:[#allocation8 + $0x34] sm:$0xf]
    %v289 = vld [vmem:[#allocation8 + $0x38] sm:$0xf]
    %v290 = vld [vmem:[#allocation8 + $0x3c] sm:$0xf]
    %v307 = vunpack.c.l.b16 %v275
    %v308 = vunpack.c.l.b16 %v276
    %v309 = vunpack.c.l.b16 %v277
    %v310 = vunpack.c.l.b16 %v278
    %v311 = vunpack.c.l.b16 %v279
    %v312 = vunpack.c.l.b16 %v280
    %v313 = vunpack.c.l.b16 %v281
    %v314 = vunpack.c.l.b16 %v282
    %v315 = vunpack.c.l.b16 %v283
    %v316 = vunpack.c.l.b16 %v284
    %v317 = vunpack.c.l.b16 %v285
    %v318 = vunpack.c.l.b16 %v286
    %v319 = vunpack.c.l.b16 %v287
    %v320 = vunpack.c.l.b16 %v288
    %v321 = vunpack.c.l.b16 %v289
    %v322 = vunpack.c.l.b16 %v290
    %v323 = vpack.c.b16 %v308, %v307
    %v324 = vpack.c.b16 %v310, %v309
    %v325 = vpack.c.b16 %v312, %v311
    %v326 = vpack.c.b16 %v314, %v313
    %v327 = vpack.c.b16 %v316, %v315
    %v328 = vpack.c.b16 %v318, %v317
    %v329 = vpack.c.b16 %v320, %v319
    %v330 = vpack.c.b16 %v322, %v321
    %339 = vmatpush.bf16.msra.mxu0 %v330
    %340 = vmatpush.bf16.msra.mxu0 %v329
    %341 = vmatpush.bf16.msra.mxu0 %v328
    %342 = vmatpush.bf16.msra.mxu0 %v327
    %343 = vmatpush.bf16.msra.mxu0 %v326
    %344 = vmatpush.bf16.msra.mxu0 %v325
    %345 = vmatpush.bf16.msra.mxu0 %v324
    %346 = vmatpush.bf16.msra.mxu0 %v323
    %347 = vmatmul.bf16.gmra.mxu0 %v274
    %v348 = vpop.f32.mrf.mxu0
    %v349 = vadd.f32 0.0, %v348
    %v350 = vpop.f32.mrf.mxu0
    %351 = vdwg.mxu0
    %v352 = vpack.c.bf16 %v349, %v349
    %v353 = vld [vmem:[%s6] sm:$0x1]
    %v355 = vpack.i.b16 %v353, %v353
    %v357 = vperm.slane %v355, 0
    %v358 = vunpack.c.l.bf16 %v352
    %v359 = vunpack.c.l.bf16 %v357
    %v360 = vadd.f32 %v358, %v359
    %v361 = vpack.c.bf16 %v360, %v360
    %v362 = vunpack.c.l.bf16 %v361
    %v363 = vmul.f32 %v362, 0.010009766
    %v364 = vpack.c.bf16 %v363, %v363
    %v365 = vunpack.c.l.bf16 %v364
    %v366 = vmax.f32 %v362, %v365
    %v367 = vpack.c.bf16 %v366, %v366
    %v368 = vld [vmem:[#allocation10] sm:$0xf]
    %v369 = vld [vmem:[#allocation10 + $0x4] sm:$0xf]
    %v370 = vld [vmem:[#allocation10 + $0x8] sm:$0xf]
    %v371 = vld [vmem:[#allocation10 + $0xc] sm:$0xf]
    %v372 = vld [vmem:[#allocation10 + $0x10] sm:$0xf]
    %v373 = vld [vmem:[#allocation10 + $0x14] sm:$0xf]
    %v374 = vld [vmem:[#allocation10 + $0x18] sm:$0xf]
    %v375 = vld [vmem:[#allocation10 + $0x1c] sm:$0xf]
    %v376 = vld [vmem:[#allocation10 + $0x20] sm:$0xf]
    %v377 = vld [vmem:[#allocation10 + $0x24] sm:$0xf]
    %v378 = vld [vmem:[#allocation10 + $0x28] sm:$0xf]
    %v379 = vld [vmem:[#allocation10 + $0x2c] sm:$0xf]
    %v380 = vld [vmem:[#allocation10 + $0x30] sm:$0xf]
    %v381 = vld [vmem:[#allocation10 + $0x34] sm:$0xf]
    %v382 = vld [vmem:[#allocation10 + $0x38] sm:$0xf]
    %v383 = vld [vmem:[#allocation10 + $0x3c] sm:$0xf]
    %v400 = vunpack.c.l.b16 %v368
    %v401 = vunpack.c.l.b16 %v369
    %v402 = vunpack.c.l.b16 %v370
    %v403 = vunpack.c.l.b16 %v371
    %v404 = vunpack.c.l.b16 %v372
    %v405 = vunpack.c.l.b16 %v373
    %v406 = vunpack.c.l.b16 %v374
    %v407 = vunpack.c.l.b16 %v375
    %v408 = vunpack.c.l.b16 %v376
    %v409 = vunpack.c.l.b16 %v377
    %v410 = vunpack.c.l.b16 %v378
    %v411 = vunpack.c.l.b16 %v379
    %v412 = vunpack.c.l.b16 %v380
    %v413 = vunpack.c.l.b16 %v381
    %v414 = vunpack.c.l.b16 %v382
    %v415 = vunpack.c.l.b16 %v383
    %v416 = vpack.c.b16 %v401, %v400
    %v417 = vpack.c.b16 %v403, %v402
    %v418 = vpack.c.b16 %v405, %v404
    %v419 = vpack.c.b16 %v407, %v406
    %v420 = vpack.c.b16 %v409, %v408
    %v421 = vpack.c.b16 %v411, %v410
    %v422 = vpack.c.b16 %v413, %v412
    %v423 = vpack.c.b16 %v415, %v414
    %432 = vmatpush.bf16.msra.mxu0 %v423
    %433 = vmatpush.bf16.msra.mxu0 %v422
    %434 = vmatpush.bf16.msra.mxu0 %v421
    %435 = vmatpush.bf16.msra.mxu0 %v420
    %436 = vmatpush.bf16.msra.mxu0 %v419
    %437 = vmatpush.bf16.msra.mxu0 %v418
    %438 = vmatpush.bf16.msra.mxu0 %v417
    %439 = vmatpush.bf16.msra.mxu0 %v416
    %440 = vmatmul.bf16.gmra.mxu0 %v367
    %v441 = vpop.f32.mrf.mxu0
    %v442 = vadd.f32 0.0, %v441
    %v443 = vpop.f32.mrf.mxu0
    %444 = vdwg.mxu0
    %v445 = vpack.c.bf16 %v442, %v442
    %v446 = vld [vmem:[%s8] sm:$0x1]
    %v448 = vpack.i.b16 %v446, %v446
    %v450 = vperm.slane %v448, 0
    %v451 = vunpack.c.l.bf16 %v445
    %v452 = vunpack.c.l.bf16 %v450
    %v453 = vadd.f32 %v451, %v452
    %v454 = vpack.c.bf16 %v453, %v453
    %v455 = vunpack.c.l.bf16 %v454
    %v456 = vmul.f32 %v455, 0.010009766
    %v457 = vpack.c.bf16 %v456, %v456
    %v458 = vunpack.c.l.bf16 %v457
    %v459 = vmax.f32 %v455, %v458
    %v460 = vpack.c.bf16 %v459, %v459
    %v461 = vld [vmem:[#allocation11] sm:$0xf]
    %v462 = vld [vmem:[#allocation11 + $0x4] sm:$0xf]
    %v463 = vld [vmem:[#allocation11 + $0x8] sm:$0xf]
    %v464 = vld [vmem:[#allocation11 + $0xc] sm:$0xf]
    %v465 = vld [vmem:[#allocation11 + $0x10] sm:$0xf]
    %v466 = vld [vmem:[#allocation11 + $0x14] sm:$0xf]
    %v467 = vld [vmem:[#allocation11 + $0x18] sm:$0xf]
    %v468 = vld [vmem:[#allocation11 + $0x1c] sm:$0xf]
    %v469 = vld [vmem:[#allocation11 + $0x20] sm:$0xf]
    %v470 = vld [vmem:[#allocation11 + $0x24] sm:$0xf]
    %v471 = vld [vmem:[#allocation11 + $0x28] sm:$0xf]
    %v472 = vld [vmem:[#allocation11 + $0x2c] sm:$0xf]
    %v473 = vld [vmem:[#allocation11 + $0x30] sm:$0xf]
    %v474 = vld [vmem:[#allocation11 + $0x34] sm:$0xf]
    %v475 = vld [vmem:[#allocation11 + $0x38] sm:$0xf]
    %v476 = vld [vmem:[#allocation11 + $0x3c] sm:$0xf]
    %v477 = vld [vmem:[%s10] sm:$0x1]
    %v479 = vperm.slane %v477, 0
    %v497 = vunpack.c.l.b16 %v461
    %v498 = vunpack.c.l.b16 %v462
    %v499 = vunpack.c.l.b16 %v463
    %v500 = vunpack.c.l.b16 %v464
    %v501 = vunpack.c.l.b16 %v465
    %v502 = vunpack.c.l.b16 %v466
    %v503 = vunpack.c.l.b16 %v467
    %v504 = vunpack.c.l.b16 %v468
    %v505 = vunpack.c.l.b16 %v469
    %v506 = vunpack.c.l.b16 %v470
    %v507 = vunpack.c.l.b16 %v471
    %v508 = vunpack.c.l.b16 %v472
    %v509 = vunpack.c.l.b16 %v473
    %v510 = vunpack.c.l.b16 %v474
    %v511 = vunpack.c.l.b16 %v475
    %v512 = vunpack.c.l.b16 %v476
    %v513 = vpack.c.b16 %v498, %v497
    %v514 = vpack.c.b16 %v500, %v499
    %v515 = vpack.c.b16 %v502, %v501
    %v516 = vpack.c.b16 %v504, %v503
    %v517 = vpack.c.b16 %v506, %v505
    %v518 = vpack.c.b16 %v508, %v507
    %v519 = vpack.c.b16 %v510, %v509
    %v520 = vpack.c.b16 %v512, %v511
    %529 = vmatpush.bf16.msra.mxu0 %v520
    %530 = vmatpush.bf16.msra.mxu0 %v519
    %531 = vmatpush.bf16.msra.mxu0 %v518
    %532 = vmatpush.bf16.msra.mxu0 %v517
    %533 = vmatpush.bf16.msra.mxu0 %v516
    %534 = vmatpush.bf16.msra.mxu0 %v515
    %535 = vmatpush.bf16.msra.mxu0 %v514
    %536 = vmatpush.bf16.msra.mxu0 %v513
    %537 = vmatmul.bf16.gmra.mxu0 %v460
    %v538 = vpop.f32.mrf.mxu0
    %v539 = vadd.f32 %v479, %v538
    %v540 = vpop.f32.mrf.mxu0
    %541 = vdwg.mxu0
    %v542 = vlaneseq
    %v543 = vand.u32 %v542, 127
    %vm544 = vcmp.lt.s32.totalorder %v543, 8
    %v545 = vsel %vm544, %v539, -1e+30
    %546 = vmax.xlane.f32.xlu0 %v545
    %v547 = vpop.xlane.xlu0 %546
    %v548 = vsub.f32 %v545, %v547
    %v549 = vmul.f32 %v548, 1.442695
    %v550 = vpow.pop %v549
    %551 = vadd.xlane.f32.xlu0 %v550
    %v552 = vpop.xlane.xlu0 %551
    %v553 = vrcp.pop %v552
    %v554 = vmul.f32 %v552, %v553
    %v555 = vsub.f32 1.0, %v554
    %v556 = vmul.f32 %v553, %v555
    %v557 = vadd.f32 %v553, %v556
    %vm558 = vweird.f32 %v552
    %vm559 = vweird.f32 %v553
    %vm560 = vmor %vm558, %vm559
    %v561 = vsel %vm560, %v553, %v557
    %v562 = vand.u32 2147483647, %v552
    %vm563 = vcmp.eq.f32.partialorder %v562, 8.507059e+37
    %v564 = vand.u32 %v552, 2147483648
    %v565 = vor.u32 1.1754944e-38, %v564
    %v566 = vsel %vm563, %v565, %v561
    %v567 = vmul.f32 %v550, %v566
    %vm568 = vcmp.eq.s32.totalorder %v543, 8
    %v569 = vsel %vm568, %v539, 0.0
    %v570 = vsel %vm544, %v567, %v569
    %v571 = vpack.c.bf16 %v570, %v570
    %572 = vst [vmem:[#allocation13] sm:$0xf] %v571
    // Predicated region
    $region70: #{tpu_custom_call.1} parent=1 // pred_check
      _
    $region71: #{tpu_custom_call.1} parent=1 // pred_check_branch
      %574 = sbr.rel (0) target = $region73
    $region72: #{tpu_custom_call.1} parent=1 // pred_region
      %576 = vsyncadd [#allocation4], 0
      %s578 = sshll.u32 [#allocation13], 4
      %s579 = int_to_ptr.vmem [resolvable:$true] %s578
      %s580 = sshll.u32 %s11, 4
      %s581 = int_to_ptr.hbm [resolvable:$true] %s580
      %583 = dma.vmem_to_hbm [thread:$0]  %s579, 64, %s581, [#allocation4]
    $region73: #{tpu_custom_call.1} parent=1 // pred_fallthru
      _
    // Predicated region
    $region74: #{tpu_custom_call.1} parent=1 // pred_check
      _
    $region75: #{tpu_custom_call.1} parent=1 // pred_check_branch
      %585 = sbr.rel (0) target = $region77
    $region76: #{tpu_custom_call.1} parent=1 // pred_region
      %587 = dma.done [#allocation4], 64
    $region77: #{tpu_custom_call.1} parent=1 // pred_fallthru
      _
    %588 = vsyncpa [#allocation3], 1
    %589 = vsyncpa [#allocation6], 1
    %590 = vsyncpa [#allocation9], 1
    %591 = vsyncpa [#allocation12], 1
    %592 = vsyncpa [#allocation4], 1

</llo_original>
